<compile_context>
chip_gen: v7x
topology: tpu7x:2x2x1
jax: 0.10.0
libtpu: 0.0.40
codegen_flags: <defaults>
</compile_context>

<pallas_src>
import functools

import jax
import jax.numpy as jnp
from jax.experimental import pallas as pl
from jax.experimental.pallas import tpu as pltpu


def _make_kernel(nb_layer: int, coeff_normal: float):
    def kernel(x_ref, w_int_ref, b_int_ref, wh_ref, bh_ref,
               w_out_ref, b_out_ref, o_ref):
        # x tile: (2, TN); row 0 is r (scaling already folded into w_int), row 1 is t.
        x = x_ref[...]                      # (2, TN) f32
        w_int = w_int_ref[...]              # (H, 2)  f32 (r-scale pre-folded)
        b_int = b_int_ref[...]              # (H, 1)

        # Input layer as two broadcast FMAs (avoids a K=2 MXU matmul):
        #   h[o, n] = tanh(w[o,0]*r[n] + w[o,1]*t[n] + b[o])
        h = jnp.tanh(
            w_int[:, 0:1] * x[0:1, :]
            + w_int[:, 1:2] * x[1:2, :]
            + b_int
        )                                    # (H, TN)

        # Hidden layers: (H, H) @ (H, TN) on the MXU (static unroll).
        for l in range(nb_layer):
            h = jnp.tanh(
                jnp.dot(wh_ref[l], h, preferred_element_type=jnp.float32)
                + bh_ref[l]
            )

        # Output layer as a sublane reduction (avoids an M=1 matmul):
        #   y[0, n] = sigmoid(sum_i w_out[i] * h[i, n] + b_out)
        y = jax.nn.sigmoid(
            jnp.sum(h * w_out_ref[...], axis=0, keepdims=True)  # (1, TN)
            + b_out_ref[...]
        )
        o_ref[...] = (y * coeff_normal).astype(o_ref.dtype)

    return kernel


def pinns_reload_forward(x, params, *, nb_layer, coeff_normal, ordre_R, tn=512):
    """x: (N, 2) float32 [r, t] columns. Returns (N, 1) float32."""
    N = x.shape[0]
    w_int, b_int, wh, bh, w_out, b_out = params
    H = b_int.shape[-1]
    r_scale = 10.0 ** (-ordre_R - 1)

    # ---- host/wrapper-side parameter transforms (tiny, once per call) ----
    # Fold r-column scaling into the input weights; go feature-first so the
    # batch dimension maps onto the 128-wide lane axis inside the kernel.
    w_int_k = (w_int * jnp.array([[r_scale], [1.0]], dtype=w_int.dtype)).T  # (H, 2)
    b_int_k = b_int.T                                                        # (H, 1)
    wh_k = jnp.swapaxes(wh, 1, 2)                                            # (L, H, H)
    bh_k = jnp.swapaxes(bh, 1, 2)                                            # (L, H, 1)
    w_out_k = w_out                                                          # (H, 1)
    b_out_k = b_out                                                          # (1, 1)

    # ---- pad batch to a multiple of the tile (no divisibility assert) ----
    n_pad = pl.cdiv(N, tn) * tn
    x_t = x.T                                                                # (2, N)
    if n_pad != N:
        x_t = jnp.pad(x_t, ((0, 0), (0, n_pad - N)))

    kernel = _make_kernel(nb_layer, coeff_normal)

    cost = pl.CostEstimate(
        flops=int(N * (4 * H + 2 * nb_layer * H * H + 2 * H)),
        transcendentals=int(N * (H * (nb_layer + 1) + 1)),
        bytes_accessed=int(N * 12 + 4 * (2 * H + H + nb_layer * (H * H + H) + H + 1)),
    )

    out = pl.pallas_call(
        kernel,
        out_shape=jax.ShapeDtypeStruct((1, n_pad), x.dtype),
        grid=(n_pad // tn,),
        in_specs=[
            pl.BlockSpec((2, tn), lambda i: (0, i)),       # x tiled on the lane axis
            pl.BlockSpec(w_int_k.shape, lambda i: (0, 0)),  # weights fully resident
            pl.BlockSpec(b_int_k.shape, lambda i: (0, 0)),
            pl.BlockSpec(wh_k.shape, lambda i: (0, 0, 0)),
            pl.BlockSpec(bh_k.shape, lambda i: (0, 0, 0)),
            pl.BlockSpec(w_out_k.shape, lambda i: (0, 0)),
            pl.BlockSpec(b_out_k.shape, lambda i: (0, 0)),
        ],
        out_specs=pl.BlockSpec((1, tn), lambda i: (0, i)),  # lane-dense output slab
        compiler_params=pltpu.CompilerParams(
            dimension_semantics=("parallel",),
            vmem_limit_bytes=32 * 1024 * 1024,
        ),
        cost_estimate=cost,
    )(x_t, w_int_k, b_int_k, wh_k, bh_k, w_out_k, b_out_k)

    return out[:, :N].T                                     # (N, 1)


def init_params(key, nb_layer, hidden_layer):
    """Deterministic init matching PyTorch nn.Linear default (U[-1/sqrt(fan_in), +])."""
    def linear(k, fan_in, fan_out):
        kw, kb = jax.random.split(k)
        bound = 1.0 / jnp.sqrt(float(fan_in))
        w = jax.random.uniform(kw, (fan_in, fan_out), jnp.float32, -bound, bound)
        b = jax.random.uniform(kb, (1, fan_out), jnp.float32, -bound, bound)
        return w, b

    keys = jax.random.split(key, nb_layer + 2)
    w_int, b_int = linear(keys[0], 2, hidden_layer)
    wh_list, bh_list = [], []
    for l in range(nb_layer):
        w, b = linear(keys[1 + l], hidden_layer, hidden_layer)
        wh_list.append(w)
        bh_list.append(b)
    wh = jnp.stack(wh_list, axis=0)                    # (nb_layer, H, H)
    bh = jnp.stack(bh_list, axis=0)                    # (nb_layer, 1, H)
    w_out, b_out = linear(keys[-1], hidden_layer, 1)   # (H, 1), (1, 1)
    # TODO(synk): var_R adds an nn.Parameter `R` that is NOT used in forward(); omitted.
    return w_int, b_int, wh, bh, w_out, b_out


def reference_forward(x, params, *, nb_layer, coeff_normal, ordre_R):
    """Pure-JAX reference mirroring the PyTorch forward."""
    w_int, b_int, wh, bh, w_out, b_out = params
    X_r = x[:, 0:1] * (10.0 ** (-ordre_R - 1))
    X_t = x[:, 1:2]
    h = jnp.concatenate([X_r, X_t], axis=1)
    h = jnp.tanh(h @ w_int + b_int)
    for l in range(nb_layer):
        h = jnp.tanh(h @ wh[l] + bh[l])
    y = jax.nn.sigmoid(h @ w_out + b_out)
    return y * coeff_normal


if __name__ == "__main__":
    # module hyper-params (small, consistent with the PyTorch __init__)
    NB_LAYER = 2
    HIDDEN = 32
    COEFF_NORMAL = 1.5
    ORDRE_R = 3
    N = 300          # batch of (r, t) collocation points (not a tile multiple)
    TN = 256         # lane-dense batch tile; grid has 2 steps (keeps 2 TCs busy on v7x)

    root = jax.random.PRNGKey(0)
    k_x, k_p = jax.random.split(root)
    x = jax.random.uniform(k_x, (N, 2), jnp.float32, 0.0, 1.0)
    params = init_params(k_p, NB_LAYER, HIDDEN)

    fwd = functools.partial(
        pinns_reload_forward,
        nb_layer=NB_LAYER,
        coeff_normal=COEFF_NORMAL,
        ordre_R=ORDRE_R,
        tn=TN,
    )

    out = jax.jit(lambda a: fwd(a, params))(x)
    out = jax.block_until_ready(out)

    ref = reference_forward(
        x, params, nb_layer=NB_LAYER, coeff_normal=COEFF_NORMAL, ordre_R=ORDRE_R
    )
    assert out.shape == (N, 1), out.shape
    assert jnp.allclose(out, ref, atol=2e-5, rtol=2e-5), (out, ref)

    print("KERNEL_OK")
</pallas_src>

<mosaic_0001>
module attributes {stable_mosaic.version = 11 : i64} {
  func.func @kernel(%arg0: i32, %arg1: memref<2x256xf32, #tpu.memory_space<vmem>>, %arg2: memref<32x2xf32, #tpu.memory_space<vmem>>, %arg3: memref<32x1xf32, #tpu.memory_space<vmem>>, %arg4: memref<2x32x32xf32, #tpu.memory_space<vmem>>, %arg5: memref<2x32x1xf32, #tpu.memory_space<vmem>>, %arg6: memref<32x1xf32, #tpu.memory_space<vmem>>, %arg7: memref<1x1xf32, #tpu.memory_space<vmem>>, %arg8: memref<1x256xf32, #tpu.memory_space<vmem>>) attributes {dimension_semantics = [#tpu.dimension_semantics<parallel>], iteration_bounds = array<i64: 2>, scalar_prefetch = 0 : i64, scratch_operands = 0 : i64, tpu.core_type = #tpu.core_type<tc>, window_params = [{transform_indices = @transform_0, window_bounds = array<i64: 2, 256>}, {pipeline_mode = #tpu.pipeline_mode<synchronous>, transform_indices = @transform_1, window_bounds = array<i64: 32, 2>}, {pipeline_mode = #tpu.pipeline_mode<synchronous>, transform_indices = @transform_2, window_bounds = array<i64: 32, 1>}, {pipeline_mode = #tpu.pipeline_mode<synchronous>, transform_indices = @transform_3, window_bounds = array<i64: 2, 32, 32>}, {pipeline_mode = #tpu.pipeline_mode<synchronous>, transform_indices = @transform_4, window_bounds = array<i64: 2, 32, 1>}, {pipeline_mode = #tpu.pipeline_mode<synchronous>, transform_indices = @transform_5, window_bounds = array<i64: 32, 1>}, {pipeline_mode = #tpu.pipeline_mode<synchronous>, transform_indices = @transform_6, window_bounds = array<i64: 1, 1>}, {transform_indices = @transform_7, window_bounds = array<i64: 1, 256>}]} {
    %c0 = arith.constant 0 : index
    %c0_0 = arith.constant 0 : index
    %0 = vector.load %arg1[%c0, %c0_0] : memref<2x256xf32, #tpu.memory_space<vmem>>, vector<2x256xf32>
    %c0_1 = arith.constant 0 : index
    %c0_2 = arith.constant 0 : index
    %1 = vector.load %arg2[%c0_1, %c0_2] : memref<32x2xf32, #tpu.memory_space<vmem>>, vector<32x2xf32>
    %c0_3 = arith.constant 0 : index
    %c0_4 = arith.constant 0 : index
    %2 = vector.load %arg3[%c0_3, %c0_4] : memref<32x1xf32, #tpu.memory_space<vmem>>, vector<32x1xf32>
    %3 = vector.extract_strided_slice %1 {offsets = [0, 0], sizes = [32, 1], strides = [1, 1]} : vector<32x2xf32> to vector<32x1xf32>
    %4 = vector.extract_strided_slice %0 {offsets = [0, 0], sizes = [1, 256], strides = [1, 1]} : vector<2x256xf32> to vector<1x256xf32>
    %5 = vector.broadcast %3 : vector<32x1xf32> to vector<32x256xf32>
    %6 = vector.broadcast %4 : vector<1x256xf32> to vector<32x256xf32>
    %7 = arith.mulf %5, %6 : vector<32x256xf32>
    %8 = vector.extract_strided_slice %1 {offsets = [0, 1], sizes = [32, 1], strides = [1, 1]} : vector<32x2xf32> to vector<32x1xf32>
    %9 = vector.extract_strided_slice %0 {offsets = [1, 0], sizes = [1, 256], strides = [1, 1]} : vector<2x256xf32> to vector<1x256xf32>
    %10 = vector.broadcast %8 : vector<32x1xf32> to vector<32x256xf32>
    %11 = vector.broadcast %9 : vector<1x256xf32> to vector<32x256xf32>
    %12 = arith.mulf %10, %11 : vector<32x256xf32>
    %13 = arith.addf %7, %12 : vector<32x256xf32>
    %14 = vector.broadcast %2 : vector<32x1xf32> to vector<32x256xf32>
    %15 = arith.addf %13, %14 : vector<32x256xf32>
    %16 = math.tanh %15 : vector<32x256xf32>
    %c0_5 = arith.constant 0 : index
    %c0_6 = arith.constant 0 : index
    %c0_7 = arith.constant 0 : index
    %17 = vector.load %arg4[%c0_5, %c0_6, %c0_7] : memref<2x32x32xf32, #tpu.memory_space<vmem>>, vector<1x32x32xf32>
    %18 = vector.shape_cast %17 : vector<1x32x32xf32> to vector<32x32xf32>
    %cst = arith.constant dense<0.000000e+00> : vector<32x256xf32>
    %19 = tpu.matmul %18, %16, %cst {dimension_numbers = #tpu.dot_dimension_numbers<[1], [0], [0], [1], [0, 0, 1, 1], [], []>} : vector<32x32xf32>, vector<32x256xf32>, vector<32x256xf32> -> vector<32x256xf32>
    %c0_8 = arith.constant 0 : index
    %c0_9 = arith.constant 0 : index
    %c0_10 = arith.constant 0 : index
    %20 = vector.load %arg5[%c0_8, %c0_9, %c0_10] : memref<2x32x1xf32, #tpu.memory_space<vmem>>, vector<1x32x1xf32>
    %21 = vector.shape_cast %20 : vector<1x32x1xf32> to vector<32x1xf32>
    %22 = vector.broadcast %21 : vector<32x1xf32> to vector<32x256xf32>
    %23 = arith.addf %19, %22 : vector<32x256xf32>
    %24 = math.tanh %23 : vector<32x256xf32>
    %c1 = arith.constant 1 : index
    %c0_11 = arith.constant 0 : index
    %c0_12 = arith.constant 0 : index
    %25 = vector.load %arg4[%c1, %c0_11, %c0_12] : memref<2x32x32xf32, #tpu.memory_space<vmem>>, vector<1x32x32xf32>
    %26 = vector.shape_cast %25 : vector<1x32x32xf32> to vector<32x32xf32>
    %cst_13 = arith.constant dense<0.000000e+00> : vector<32x256xf32>
    %27 = tpu.matmul %26, %24, %cst_13 {dimension_numbers = #tpu.dot_dimension_numbers<[1], [0], [0], [1], [0, 0, 1, 1], [], []>} : vector<32x32xf32>, vector<32x256xf32>, vector<32x256xf32> -> vector<32x256xf32>
    %c1_14 = arith.constant 1 : index
    %c0_15 = arith.constant 0 : index
    %c0_16 = arith.constant 0 : index
    %28 = vector.load %arg5[%c1_14, %c0_15, %c0_16] : memref<2x32x1xf32, #tpu.memory_space<vmem>>, vector<1x32x1xf32>
    %29 = vector.shape_cast %28 : vector<1x32x1xf32> to vector<32x1xf32>
    %30 = vector.broadcast %29 : vector<32x1xf32> to vector<32x256xf32>
    %31 = arith.addf %27, %30 : vector<32x256xf32>
    %32 = math.tanh %31 : vector<32x256xf32>
    %c0_17 = arith.constant 0 : index
    %c0_18 = arith.constant 0 : index
    %33 = vector.load %arg6[%c0_17, %c0_18] : memref<32x1xf32, #tpu.memory_space<vmem>>, vector<32x1xf32>
    %34 = vector.broadcast %33 : vector<32x1xf32> to vector<32x256xf32>
    %35 = arith.mulf %32, %34 : vector<32x256xf32>
    %cst_19 = arith.constant dense<0.000000e+00> : vector<256xf32>
    %36 = vector.multi_reduction <add>, %35, %cst_19 [0] : vector<32x256xf32> to vector<256xf32>
    %37 = vector.shape_cast %36 : vector<256xf32> to vector<1x256xf32>
    %c0_20 = arith.constant 0 : index
    %c0_21 = arith.constant 0 : index
    %38 = vector.load %arg7[%c0_20, %c0_21] : memref<1x1xf32, #tpu.memory_space<vmem>>, vector<1x1xf32>
    %39 = vector.broadcast %38 : vector<1x1xf32> to vector<1x256xf32>
    %40 = arith.addf %37, %39 : vector<1x256xf32>
    %41 = arith.negf %40 : vector<1x256xf32>
    %42 = math.exp %41 : vector<1x256xf32>
    %cst_22 = arith.constant 1.000000e+00 : f32
    %43 = vector.broadcast %cst_22 : f32 to vector<1x256xf32>
    %44 = arith.addf %43, %42 : vector<1x256xf32>
    %45 = arith.divf %43, %44 : vector<1x256xf32>
    %cst_23 = arith.constant 1.500000e+00 : f32
    %46 = vector.broadcast %cst_23 : f32 to vector<1x256xf32>
    %47 = arith.mulf %45, %46 : vector<1x256xf32>
    %c0_24 = arith.constant 0 : index
    %c0_25 = arith.constant 0 : index
    %48 = vector.load %arg8[%c0_24, %c0_25] : memref<1x256xf32, #tpu.memory_space<vmem>>, vector<1x256xf32>
    tpu.vector_store %arg8[%c0_24, %c0_25], %47 {strides = array<i32>} : memref<1x256xf32, #tpu.memory_space<vmem>>, vector<1x256xf32>,
    return
  }
  func.func @transform_0(%arg0: i32) -> (i32, i32) {
    %c0_i32 = arith.constant 0 : i32
    %c0_i32_0 = arith.constant 0 : i32
    return %c0_i32, %arg0 : i32, i32
  }
  func.func @transform_1(%arg0: i32) -> (i32, i32) {
    %c0_i32 = arith.constant 0 : i32
    %c0_i32_0 = arith.constant 0 : i32
    %c0_i32_1 = arith.constant 0 : i32
    return %c0_i32, %c0_i32_0 : i32, i32
  }
  func.func @transform_2(%arg0: i32) -> (i32, i32) {
    %c0_i32 = arith.constant 0 : i32
    %c0_i32_0 = arith.constant 0 : i32
    %c0_i32_1 = arith.constant 0 : i32
    return %c0_i32, %c0_i32_0 : i32, i32
  }
  func.func @transform_3(%arg0: i32) -> (i32, i32, i32) {
    %c0_i32 = arith.constant 0 : i32
    %c0_i32_0 = arith.constant 0 : i32
    %c0_i32_1 = arith.constant 0 : i32
    %c0_i32_2 = arith.constant 0 : i32
    return %c0_i32, %c0_i32_0, %c0_i32_1 : i32, i32, i32
  }
  func.func @transform_4(%arg0: i32) -> (i32, i32, i32) {
    %c0_i32 = arith.constant 0 : i32
    %c0_i32_0 = arith.constant 0 : i32
    %c0_i32_1 = arith.constant 0 : i32
    %c0_i32_2 = arith.constant 0 : i32
    return %c0_i32, %c0_i32_0, %c0_i32_1 : i32, i32, i32
  }
  func.func @transform_5(%arg0: i32) -> (i32, i32) {
    %c0_i32 = arith.constant 0 : i32
    %c0_i32_0 = arith.constant 0 : i32
    %c0_i32_1 = arith.constant 0 : i32
    return %c0_i32, %c0_i32_0 : i32, i32
  }
  func.func @transform_6(%arg0: i32) -> (i32, i32) {
    %c0_i32 = arith.constant 0 : i32
    %c0_i32_0 = arith.constant 0 : i32
    %c0_i32_1 = arith.constant 0 : i32
    return %c0_i32, %c0_i32_0 : i32, i32
  }
  func.func @transform_7(%arg0: i32) -> (i32, i32) {
    %c0_i32 = arith.constant 0 : i32
    %c0_i32_0 = arith.constant 0 : i32
    return %c0_i32, %arg0 : i32, i32
  }
}

</mosaic_0001>

<llo_original>
// kernel: _lambda_.1
$region0: #{_lambda_.1}
  #allocation0 [shape = 'u32[]', space=smem, size = 0x4, offset = 0x4, fixed_abs, tag = 'smem constant byte address 0x4 - core index']
  #allocation1 [shape = 'u32[144,128]{1,0:T(1,128)}', space=vmem, size = 0x12000, scoped, tag = 'internal scratch']
  #allocation2 [shape = 'f32[1,1]{1,0:T(1,128)S(1)}', space=vmem, size = 0x200, scoped, tag = 'scoped memory for _lambda_.1']
  %s0 = inlined_call_operand.vmem [shape: f32[2,512], index: 0, kind: input, shape index: {}]
  %s1 = inlined_call_operand.vmem [shape: f32[32,2], index: 1, kind: input, shape index: {}]
  %s2 = inlined_call_operand.hbm [shape: f32[32,1], index: 2, kind: input, shape index: {}]
  %s3 = inlined_call_operand.hbm [shape: f32[2,32,32], index: 3, kind: input, shape index: {}]
  %s4 = inlined_call_operand.hbm [shape: f32[2,32,1], index: 4, kind: input, shape index: {}]
  %s5 = inlined_call_operand.hbm [shape: f32[32,1], index: 5, kind: input, shape index: {}]
  %s6 = inlined_call_operand.<no memory space> [shape: f32[1,1], index: 6, kind: input, shape index: {}]
  %s7 = inlined_call_operand.vmem [shape: f32[1,512], index: 7, kind: output, shape index: {}]
  %s8 = sld [smem:[#allocation0]]
  $region77: #{_lambda_.1} parent=0
    _
  %s10 = ssub.s32 1, %s8
  %s11 = scalar_select 0, %s10, %s8
  %v12 = vstv %s6
  %13 = vst [vmem:[#allocation2] sm:$0x1] %v12
  $region1: #{_lambda_.1} parent=0
    #allocation3 [shape = 'u8[16384]{0}', space=vmem, size = 0x4000, scoped, tag = 'input window, operand 2, single buffered']
    #allocation4 [shape = 's32[2]{0}', space=sflag, size = 0x8, scoped, tag = 'scoped memory for _lambda_.1']
    #allocation5 [shape = 'u8[32768]{0}', space=vmem, size = 0x8000, scoped, tag = 'input window, operand 3, single buffered']
    #allocation6 [shape = 's32[1]{0}', space=sflag, size = 0x4, scoped, tag = 'scoped memory for _lambda_.1']
    #allocation7 [shape = 'u8[32768]{0}', space=vmem, size = 0x8000, scoped, tag = 'input window, operand 4, single buffered']
    #allocation8 [shape = 'u8[16384]{0}', space=vmem, size = 0x4000, scoped, tag = 'input window, operand 5, single buffered']
    #allocation9 [shape = 's32[1]{0}', space=sflag, size = 0x4, scoped, tag = 'scoped memory for _lambda_.1']
    %14 = vsyncpa [#allocation4], 0
    %15 = vsyncpa [#allocation6], 0
    %16 = vsyncpa [#allocation9], 0
    loop: start=0, step=1, limit=4
    $region2: #{_lambda_.1} parent=1 // loop_pre_header
      _
    $region3: #{_lambda_.1} parent=1 // loop_header
      %s18 = sphi 0, %s22
      %p19 = scmp.ge.s32.totalorder %s18, 4
      %s28 = sphi 0, %s30
      %s31 = sphi 0, %s28
      %s32 = sphi 0, %s31
      %s48 = sphi 0, %s32
      %s52 = sphi 0, %s52
      %s54 = sphi 0, %s52
      %s55 = sphi 0, %s54
      %s69 = sphi 0, %s55
      %s73 = sphi 0, %s73
      %s75 = sphi 0, %s73
      %s76 = sphi 0, %s75
      %s90 = sphi 0, %s76
      %s94 = sphi 0, %s94
      %s96 = sphi 0, %s94
      %s97 = sphi 0, %s96
      %s111 = sphi 0, %s97
      %s115 = sphi 0, %s115
      %s117 = sphi 0, %s115
      %s118 = sphi 0, %s117
      %s132 = sphi 0, %s118
      %s136 = sphi 0, %s136
      %s138 = sphi 0, %s136
      %s139 = sphi 0, %s138
      %s153 = sphi 0, %s139
      %s157 = sphi 0, %s157
      %s159 = sphi 0, %s157
      %s160 = sphi 0, %s159
      %s174 = sphi 0, %s160
      %s180 = sphi 0, %s182
      %s183 = sphi 0, %s180
      %s184 = sphi 0, %s183
      %s200 = sphi 0, %s184
    $region4: #{_lambda_.1} parent=1 // loop_header_branch
      %21 = sbr.rel (%p19) target = $region8
    $region5: #{_lambda_.1} parent=1 // loop_body
      %s23 = ssub.s32 %s18, 1
      %s24 = ssub.s32 %s18, 2
      %s25 = sadd.s32 %s18, 1
      %s26 = ssub.s32 %s18, %s25
      %p27 = scmp.eq.s32.totalorder %s26, 0
      %s29 = sadd.s32 %s28, 1
      %s30 = scalar_select %p27, %s28, %s29
      %p33 = pneg %p27
      %p34 = scmp.eq.s32.totalorder %s18, 1
      %p35 = por %p33, %p34
      %p36 = scmp.ne.s32.totalorder %s28, %s31
      %p37 = scmp.eq.s32.totalorder %s18, 0
      %p38 = por %p36, %p37
      %p39 = scmp.ne.s32.totalorder %s28, %s31
      %p40 = scmp.eq.s32.totalorder %s23, 1
      %p41 = por %p39, %p40
      %p42 = scmp.ne.s32.totalorder %s31, %s32
      %p43 = scmp.eq.s32.totalorder %s23, 0
      %p44 = por %p42, %p43
      %p45 = scmp.ne.s32.totalorder %s31, %s32
      %p46 = scmp.eq.s32.totalorder %s24, 1
      %p47 = por %p45, %p46
      %p49 = scmp.ne.s32.totalorder %s32, %s48
      %p50 = scmp.eq.s32.totalorder %s24, 0
      %p51 = por %p49, %p50
      %s53 = sadd.s32 %s52, 1
      %p56 = scmp.eq.s32.totalorder %s18, 1
      %p57 = scmp.ne.s32.totalorder %s52, %s54
      %p58 = scmp.eq.s32.totalorder %s18, 0
      %p59 = por %p57, %p58
      %p60 = scmp.ne.s32.totalorder %s52, %s54
      %p61 = scmp.eq.s32.totalorder %s23, 1
      %p62 = por %p60, %p61
      %p63 = scmp.ne.s32.totalorder %s54, %s55
      %p64 = scmp.eq.s32.totalorder %s23, 0
      %p65 = por %p63, %p64
      %p66 = scmp.ne.s32.totalorder %s54, %s55
      %p67 = scmp.eq.s32.totalorder %s24, 1
      %p68 = por %p66, %p67
      %p70 = scmp.ne.s32.totalorder %s55, %s69
      %p71 = scmp.eq.s32.totalorder %s24, 0
      %p72 = por %p70, %p71
      %s74 = sadd.s32 %s73, 1
      %p77 = scmp.eq.s32.totalorder %s18, 1
      %p78 = scmp.ne.s32.totalorder %s73, %s75
      %p79 = scmp.eq.s32.totalorder %s18, 0
      %p80 = por %p78, %p79
      %p81 = scmp.ne.s32.totalorder %s73, %s75
      %p82 = scmp.eq.s32.totalorder %s23, 1
      %p83 = por %p81, %p82
      %p84 = scmp.ne.s32.totalorder %s75, %s76
      %p85 = scmp.eq.s32.totalorder %s23, 0
      %p86 = por %p84, %p85
      %p87 = scmp.ne.s32.totalorder %s75, %s76
      %p88 = scmp.eq.s32.totalorder %s24, 1
      %p89 = por %p87, %p88
      %p91 = scmp.ne.s32.totalorder %s76, %s90
      %p92 = scmp.eq.s32.totalorder %s24, 0
      %p93 = por %p91, %p92
      %s95 = sadd.s32 %s94, 1
      %p98 = scmp.eq.s32.totalorder %s18, 1
      %p99 = scmp.ne.s32.totalorder %s94, %s96
      %p100 = scmp.eq.s32.totalorder %s18, 0
      %p101 = por %p99, %p100
      %p102 = scmp.ne.s32.totalorder %s94, %s96
      %p103 = scmp.eq.s32.totalorder %s23, 1
      %p104 = por %p102, %p103
      %p105 = scmp.ne.s32.totalorder %s96, %s97
      %p106 = scmp.eq.s32.totalorder %s23, 0
      %p107 = por %p105, %p106
      %p108 = scmp.ne.s32.totalorder %s96, %s97
      %p109 = scmp.eq.s32.totalorder %s24, 1
      %p110 = por %p108, %p109
      %p112 = scmp.ne.s32.totalorder %s97, %s111
      %p113 = scmp.eq.s32.totalorder %s24, 0
      %p114 = por %p112, %p113
      %s116 = sadd.s32 %s115, 1
      %p119 = scmp.eq.s32.totalorder %s18, 1
      %p120 = scmp.ne.s32.totalorder %s115, %s117
      %p121 = scmp.eq.s32.totalorder %s18, 0
      %p122 = por %p120, %p121
      %p123 = scmp.ne.s32.totalorder %s115, %s117
      %p124 = scmp.eq.s32.totalorder %s23, 1
      %p125 = por %p123, %p124
      %p126 = scmp.ne.s32.totalorder %s117, %s118
      %p127 = scmp.eq.s32.totalorder %s23, 0
      %p128 = por %p126, %p127
      %p129 = scmp.ne.s32.totalorder %s117, %s118
      %p130 = scmp.eq.s32.totalorder %s24, 1
      %p131 = por %p129, %p130
      %p133 = scmp.ne.s32.totalorder %s118, %s132
      %p134 = scmp.eq.s32.totalorder %s24, 0
      %p135 = por %p133, %p134
      %s137 = sadd.s32 %s136, 1
      %p140 = scmp.eq.s32.totalorder %s18, 1
      %p141 = scmp.ne.s32.totalorder %s136, %s138
      %p142 = scmp.eq.s32.totalorder %s18, 0
      %p143 = por %p141, %p142
      %p144 = scmp.ne.s32.totalorder %s136, %s138
      %p145 = scmp.eq.s32.totalorder %s23, 1
      %p146 = por %p144, %p145
      %p147 = scmp.ne.s32.totalorder %s138, %s139
      %p148 = scmp.eq.s32.totalorder %s23, 0
      %p149 = por %p147, %p148
      %p150 = scmp.ne.s32.totalorder %s138, %s139
      %p151 = scmp.eq.s32.totalorder %s24, 1
      %p152 = por %p150, %p151
      %p154 = scmp.ne.s32.totalorder %s139, %s153
      %p155 = scmp.eq.s32.totalorder %s24, 0
      %p156 = por %p154, %p155
      %s158 = sadd.s32 %s157, 1
      %p161 = scmp.eq.s32.totalorder %s18, 1
      %p162 = scmp.ne.s32.totalorder %s157, %s159
      %p163 = scmp.eq.s32.totalorder %s18, 0
      %p164 = por %p162, %p163
      %p165 = scmp.ne.s32.totalorder %s157, %s159
      %p166 = scmp.eq.s32.totalorder %s23, 1
      %p167 = por %p165, %p166
      %p168 = scmp.ne.s32.totalorder %s159, %s160
      %p169 = scmp.eq.s32.totalorder %s23, 0
      %p170 = por %p168, %p169
      %p171 = scmp.ne.s32.totalorder %s159, %s160
      %p172 = scmp.eq.s32.totalorder %s24, 1
      %p173 = por %p171, %p172
      %p175 = scmp.ne.s32.totalorder %s160, %s174
      %p176 = scmp.eq.s32.totalorder %s24, 0
      %p177 = por %p175, %p176
      %s178 = ssub.s32 %s18, %s25
      %p179 = scmp.eq.s32.totalorder %s178, 0
      %s181 = sadd.s32 %s180, 1
      %s182 = scalar_select %p179, %s180, %s181
      %p185 = pneg %p179
      %p186 = scmp.eq.s32.totalorder %s18, 1
      %p187 = por %p185, %p186
      %p188 = scmp.ne.s32.totalorder %s180, %s183
      %p189 = scmp.eq.s32.totalorder %s18, 0
      %p190 = por %p188, %p189
      %p191 = scmp.ne.s32.totalorder %s180, %s183
      %p192 = scmp.eq.s32.totalorder %s23, 1
      %p193 = por %p191, %p192
      %p194 = scmp.ne.s32.totalorder %s183, %s184
      %p195 = scmp.eq.s32.totalorder %s23, 0
      %p196 = por %p194, %p195
      %p197 = scmp.ne.s32.totalorder %s183, %s184
      %p198 = scmp.eq.s32.totalorder %s24, 1
      %p199 = por %p197, %p198
      %p201 = scmp.ne.s32.totalorder %s184, %s200
      %p202 = scmp.eq.s32.totalorder %s24, 0
      %p203 = por %p201, %p202
      %p204 = scmp.le.s32.totalorder 1, %s18
      %p205 = scmp.lt.s32.totalorder %s18, 3
      %p206 = pnand %p204, %p205
      %p207 = pneg %p206
      // Predicated region
      $region9: #{_lambda_.1} parent=5 // pred_check
        _
      $region10: #{_lambda_.1} parent=5 // pred_check_branch
        %209 = sbr.rel (%p206) target = $region12
      $region11: #{_lambda_.1} parent=5 // pred_region
        %s210 = ssub.s32 %s18, 1
        // Predicated region
        $region13: #{_lambda_.1} parent=11 // pred_check
          %p211 = pneg %p65
        $region14: #{_lambda_.1} parent=11 // pred_check_branch
          %213 = sbr.rel (%p211) target = $region16
        $region15: #{_lambda_.1} parent=11 // pred_region
          _
        $region16: #{_lambda_.1} parent=11 // pred_fallthru
          _
        // Predicated region
        $region17: #{_lambda_.1} parent=11 // pred_check
          %p214 = pneg %p86
        $region18: #{_lambda_.1} parent=11 // pred_check_branch
          %216 = sbr.rel (%p214) target = $region20
        $region19: #{_lambda_.1} parent=11 // pred_region
          %s218 = ssub.s32 512, 512
          %219 = vsyncadd [#allocation4], %s218
          %s220 = sshll.u32 [#allocation3], 4
          %s221 = int_to_ptr.vmem [resolvable:$true] %s220
          %226 = dma.hbm_to_vmem [thread:$0]  %s2, 512, %s221, [#allocation4], 128, 128, 8
        $region20: #{_lambda_.1} parent=11 // pred_fallthru
          _
        // Predicated region
        $region21: #{_lambda_.1} parent=11 // pred_check
          %p227 = pneg %p107
        $region22: #{_lambda_.1} parent=11 // pred_check_branch
          %229 = sbr.rel (%p227) target = $region24
        $region23: #{_lambda_.1} parent=11 // pred_region
          %s231 = ssub.s32 1024, 1024
          %232 = vsyncadd [#allocation6], %s231
          %s233 = sshll.u32 [#allocation5], 4
          %s234 = int_to_ptr.vmem [resolvable:$true] %s233
          %239 = dma.hbm_to_vmem [thread:$0]  %s3, 1024, %s234, [#allocation6], 128, 128, 8
        $region24: #{_lambda_.1} parent=11 // pred_fallthru
          _
        // Predicated region
        $region25: #{_lambda_.1} parent=11 // pred_check
          %p240 = pneg %p128
        $region26: #{_lambda_.1} parent=11 // pred_check_branch
          %242 = sbr.rel (%p240) target = $region28
        $region27: #{_lambda_.1} parent=11 // pred_region
          %s244 = ssub.s32 1024, 1024
          %245 = vsyncadd [#allocation6], %s244
          %s246 = sshll.u32 [#allocation7], 4
          %s247 = int_to_ptr.vmem [resolvable:$true] %s246
          %252 = dma.hbm_to_vmem [thread:$0]  %s4, 1024, %s247, [#allocation6], 128, 128, 8
        $region28: #{_lambda_.1} parent=11 // pred_fallthru
          _
        // Predicated region
        $region29: #{_lambda_.1} parent=11 // pred_check
          %p253 = pneg %p149
        $region30: #{_lambda_.1} parent=11 // pred_check_branch
          %255 = sbr.rel (%p253) target = $region32
        $region31: #{_lambda_.1} parent=11 // pred_region
          %s257 = ssub.s32 512, 512
          %258 = vsyncadd [#allocation9], %s257
          %s259 = sshll.u32 [#allocation8], 4
          %s260 = int_to_ptr.vmem [resolvable:$true] %s259
          %265 = dma.hbm_to_vmem [thread:$0]  %s5, 512, %s260, [#allocation9], 128, 128, 8
        $region32: #{_lambda_.1} parent=11 // pred_fallthru
          _
        // Predicated region
        $region33: #{_lambda_.1} parent=11 // pred_check
          %p266 = pneg %p170
        $region34: #{_lambda_.1} parent=11 // pred_check_branch
          %268 = sbr.rel (%p266) target = $region36
        $region35: #{_lambda_.1} parent=11 // pred_region
          _
        $region36: #{_lambda_.1} parent=11 // pred_fallthru
          _
      $region12: #{_lambda_.1} parent=5 // pred_fallthru
        _
      %p269 = scmp.lt.s32.totalorder %s18, 2
      // Predicated region
      $region37: #{_lambda_.1} parent=5 // pred_check
        %p270 = pneg %p269
      $region38: #{_lambda_.1} parent=5 // pred_check_branch
        %272 = sbr.rel (%p270) target = $region40
      $region39: #{_lambda_.1} parent=5 // pred_region
        // Predicated region
        $region41: #{_lambda_.1} parent=39 // pred_check
          %p273 = pneg %p38
        $region42: #{_lambda_.1} parent=39 // pred_check_branch
          %275 = sbr.rel (%p273) target = $region44
        $region43: #{_lambda_.1} parent=39 // pred_region
          %s276 = smul.u32 2, %s18
          %p277 = scmp.lt.s32.totalorder %s276, 3
          %s278 = scalar_select %p277, %s276, 3
          %s279 = smul.addr %s278, 2
          %s280 = scalar_lea.vmem %s0, %s279
          %s281 = smul.u32 2, %s18
        $region44: #{_lambda_.1} parent=39 // pred_fallthru
          _
      $region40: #{_lambda_.1} parent=5 // pred_fallthru
        _
      %p282 = scmp.le.s32.totalorder 1, %s18
      %p283 = scmp.lt.s32.totalorder %s18, 3
      %p284 = pnand %p282, %p283
      %p285 = pneg %p284
      // Predicated region
      $region45: #{_lambda_.1} parent=5 // pred_check
        _
      $region46: #{_lambda_.1} parent=5 // pred_check_branch
        %287 = sbr.rel (%p284) target = $region48
      $region47: #{_lambda_.1} parent=5 // pred_region
        %s288 = ssub.s32 %s18, 1
        // Predicated region
        $region49: #{_lambda_.1} parent=47 // pred_check
          %p289 = pneg %p86
        $region50: #{_lambda_.1} parent=47 // pred_check_branch
          %291 = sbr.rel (%p289) target = $region52
        $region51: #{_lambda_.1} parent=47 // pred_region
          %292 = dma.done [#allocation4], 512
        $region52: #{_lambda_.1} parent=47 // pred_fallthru
          _
        // Predicated region
        $region53: #{_lambda_.1} parent=47 // pred_check
          %p293 = pneg %p107
        $region54: #{_lambda_.1} parent=47 // pred_check_branch
          %295 = sbr.rel (%p293) target = $region56
        $region55: #{_lambda_.1} parent=47 // pred_region
          %296 = dma.done [#allocation6], 1024
        $region56: #{_lambda_.1} parent=47 // pred_fallthru
          _
        // Predicated region
        $region57: #{_lambda_.1} parent=47 // pred_check
          %p297 = pneg %p128
        $region58: #{_lambda_.1} parent=47 // pred_check_branch
          %299 = sbr.rel (%p297) target = $region60
        $region59: #{_lambda_.1} parent=47 // pred_region
          %300 = dma.done [#allocation6], 1024
        $region60: #{_lambda_.1} parent=47 // pred_fallthru
          _
        // Predicated region
        $region61: #{_lambda_.1} parent=47 // pred_check
          %p301 = pneg %p149
        $region62: #{_lambda_.1} parent=47 // pred_check_branch
          %303 = sbr.rel (%p301) target = $region64
        $region63: #{_lambda_.1} parent=47 // pred_region
          %304 = dma.done [#allocation9], 512
        $region64: #{_lambda_.1} parent=47 // pred_fallthru
          _
        %s305 = smul.u32 2, %s23
        %p306 = scmp.lt.s32.totalorder %s305, 3
        %s307 = scalar_select %p306, %s305, 3
        %s308 = smul.addr %s307, 2
        %s309 = scalar_lea.vmem %s0, %s308
        %p310 = pneg %p44
        %p311 = pneg %p41
        %p312 = pneg %p65
        %p313 = pneg %p62
        %p314 = pneg %p86
        %p315 = pneg %p83
        %p316 = pneg %p107
        %p317 = pneg %p104
        %p318 = pneg %p128
        %p319 = pneg %p125
        %p320 = pneg %p149
        %p321 = pneg %p146
        %p322 = pneg %p170
        %p323 = pneg %p167
        %p324 = pneg %p196
        %p325 = pneg %p193
        %s326 = smul.u32 2, %s23
        %p327 = scmp.lt.s32.totalorder %s326, 3
        %s328 = scalar_select %p327, %s326, 3
        %s329 = scalar_lea.vmem %s7, %s328
        %s330 = smul.u32 2, %s23
        %p331 = scmp.lt.s32.totalorder %s330, 3
        %s332 = scalar_select %p331, %s330, 3
        %s333 = smul.addr %s332, 2
        %s334 = scalar_lea.vmem %s0, %s333
        %s335 = smul.u32 2, %s23
        %s336 = smul.u32 2, %s23
        %p337 = scmp.lt.s32.totalorder %s336, 3
        %s338 = scalar_select %p337, %s336, 3
        %s339 = scalar_lea.vmem %s7, %s338
        %s340 = smul.u32 2, %s23
        %v341 = vld [vmem:[%s334] sm:$0xf]
        %v342 = vld [vmem:[%s1] sm:$0xff]
        %v343 = vld [vmem:[%s1 + $0x8] sm:$0xff]
        %v344 = vld [vmem:[%s1 + $0x10] sm:$0xff]
        %v345 = vld [vmem:[%s1 + $0x18] sm:$0xff]
        %v346 = vld [vmem:[#allocation3] sm:$0xff]
        %v347 = vld [vmem:[#allocation3 + $0x8] sm:$0xff]
        %v348 = vld [vmem:[#allocation3 + $0x10] sm:$0xff]
        %v349 = vld [vmem:[#allocation3 + $0x18] sm:$0xff]
        %351 = vset.pattern.permute.xlu0 0
        %352 = vperm.xlu0 %351, %v342
        %v353 = vpop.permute.xlu0 %352
        %356 = vset.pattern.permute.xlu0 0
        %357 = vperm.xlu0 %356, %v343
        %v358 = vpop.permute.xlu0 %357
        %361 = vset.pattern.permute.xlu0 0
        %362 = vperm.xlu0 %361, %v344
        %v363 = vpop.permute.xlu0 %362
        %366 = vset.pattern.permute.xlu0 0
        %367 = vperm.xlu0 %366, %v345
        %v368 = vpop.permute.xlu0 %367
        %v371 = vlaneseq
        %v372 = vshrl.u32 %v371, 7
        %v373 = vsub.s32 0, %v372
        %v374 = vrot.slane %v341, %v373
        %v375 = vlaneseq
        %v376 = vshrl.u32 %v375, 7
        %v377 = vsub.s32 2, %v376
        %v378 = vrot.slane %v341, %v377
        %v381 = vlaneseq
        %v382 = vshrl.u32 %v381, 7
        %v383 = vsub.s32 0, %v382
        %v384 = vrot.slane %v374, %v383
        %v385 = vlaneseq
        %v386 = vshrl.u32 %v385, 7
        %v387 = vsub.s32 0, %v386
        %v388 = vrot.slane %v378, %v387
        %v389 = vmul.f32 %v353, %v384
        %v390 = vmul.f32 %v353, %v388
        %v391 = vmul.f32 %v358, %v384
        %v392 = vmul.f32 %v358, %v388
        %v393 = vmul.f32 %v363, %v384
        %v394 = vmul.f32 %v363, %v388
        %v395 = vmul.f32 %v368, %v384
        %v396 = vmul.f32 %v368, %v388
        %397 = vset.pattern.permute.xlu0 1
        %398 = vperm.xlu0 %397, %v342
        %v399 = vpop.permute.xlu0 %398
        %401 = vset.pattern.permute.xlu0 1
        %402 = vperm.xlu0 %401, %v343
        %v403 = vpop.permute.xlu0 %402
        %405 = vset.pattern.permute.xlu0 1
        %406 = vperm.xlu0 %405, %v344
        %v407 = vpop.permute.xlu0 %406
        %409 = vset.pattern.permute.xlu0 1
        %410 = vperm.xlu0 %409, %v345
        %v411 = vpop.permute.xlu0 %410
        %v413 = vlaneseq
        %v414 = vshrl.u32 %v413, 7
        %v415 = vsub.s32 1, %v414
        %v416 = vrot.slane %v341, %v415
        %v417 = vlaneseq
        %v418 = vshrl.u32 %v417, 7
        %v419 = vsub.s32 3, %v418
        %v420 = vrot.slane %v341, %v419
        %v423 = vlaneseq
        %v424 = vshrl.u32 %v423, 7
        %v425 = vsub.s32 1, %v424
        %v426 = vrot.slane %v416, %v425
        %v427 = vlaneseq
        %v428 = vshrl.u32 %v427, 7
        %v429 = vsub.s32 1, %v428
        %v430 = vrot.slane %v420, %v429
        %v431 = vmul.f32 %v399, %v426
        %v432 = vmul.f32 %v399, %v430
        %v433 = vmul.f32 %v403, %v426
        %v434 = vmul.f32 %v403, %v430
        %v435 = vmul.f32 %v407, %v426
        %v436 = vmul.f32 %v407, %v430
        %v437 = vmul.f32 %v411, %v426
        %v438 = vmul.f32 %v411, %v430
        %v439 = vadd.f32 %v389, %v431
        %v440 = vadd.f32 %v390, %v432
        %v441 = vadd.f32 %v391, %v433
        %v442 = vadd.f32 %v392, %v434
        %v443 = vadd.f32 %v393, %v435
        %v444 = vadd.f32 %v394, %v436
        %v445 = vadd.f32 %v395, %v437
        %v446 = vadd.f32 %v396, %v438
        %448 = vset.pattern.permute.xlu0 0
        %449 = vperm.xlu0 %448, %v346
        %v450 = vpop.permute.xlu0 %449
        %453 = vset.pattern.permute.xlu0 0
        %454 = vperm.xlu0 %453, %v347
        %v455 = vpop.permute.xlu0 %454
        %458 = vset.pattern.permute.xlu0 0
        %459 = vperm.xlu0 %458, %v348
        %v460 = vpop.permute.xlu0 %459
        %463 = vset.pattern.permute.xlu0 0
        %464 = vperm.xlu0 %463, %v349
        %v465 = vpop.permute.xlu0 %464
        %v467 = vadd.f32 %v439, %v450
        %v468 = vadd.f32 %v440, %v450
        %v469 = vadd.f32 %v441, %v455
        %v470 = vadd.f32 %v442, %v455
        %v471 = vadd.f32 %v443, %v460
        %v472 = vadd.f32 %v444, %v460
        %v473 = vadd.f32 %v445, %v465
        %v474 = vadd.f32 %v446, %v465
        %v475 = vtanh.pop %v467
        %v476 = vtanh.pop %v468
        %v477 = vtanh.pop %v469
        %v478 = vtanh.pop %v470
        %v479 = vtanh.pop %v471
        %v480 = vtanh.pop %v472
        %v481 = vtanh.pop %v473
        %v482 = vtanh.pop %v474
        %v483 = vld [vmem:[#allocation5] sm:$0xff]
        %v484 = vld [vmem:[#allocation5 + $0x8] sm:$0xff]
        %v485 = vld [vmem:[#allocation5 + $0x10] sm:$0xff]
        %v486 = vld [vmem:[#allocation5 + $0x18] sm:$0xff]
        %v487 = vld [vmem:[#allocation7] sm:$0xff]
        %v488 = vld [vmem:[#allocation7 + $0x8] sm:$0xff]
        %v489 = vld [vmem:[#allocation7 + $0x10] sm:$0xff]
        %v490 = vld [vmem:[#allocation7 + $0x18] sm:$0xff]
        %492 = vset.pattern.permute.xlu0 0
        %493 = vperm.xlu0 %492, %v487
        %v494 = vpop.permute.xlu0 %493
        %497 = vset.pattern.permute.xlu0 0
        %498 = vperm.xlu0 %497, %v488
        %v499 = vpop.permute.xlu0 %498
        %502 = vset.pattern.permute.xlu0 0
        %503 = vperm.xlu0 %502, %v489
        %v504 = vpop.permute.xlu0 %503
        %507 = vset.pattern.permute.xlu0 0
        %508 = vperm.xlu0 %507, %v490
        %v509 = vpop.permute.xlu0 %508
        %vm511 = vcmask 261120
        %v513 = vsel %vm511, %v483, 0
        %v516 = vsel %vm511, %v484, 0
        %v519 = vsel %vm511, %v485, 0
        %v522 = vsel %vm511, %v486, 0
        %524 = vmatprep.subr.mxu0 %v476
        %525 = vmatpush1.msra.mxu0 %v475
        %526 = vmatprep.subr.mxu0 %v478
        %527 = vmatpush1.msra.mxu0 %v477
        %528 = vmatprep.subr.mxu0 %v480
        %529 = vmatpush1.msra.mxu0 %v479
        %530 = vmatprep.subr.mxu0 %v482
        %531 = vmatpush1.msra.mxu0 %v481
        %532 = vmatprep.subr.mxu0 0.0
        %533 = vmatpush1.msra.mxu0 0.0
        %534 = vmatprep.subr.mxu0 0.0
        %535 = vmatpush1.msra.mxu0 0.0
        %536 = vmatprep.subr.mxu0 0.0
        %537 = vmatpush1.msra.mxu0 0.0
        %538 = vmatprep.subr.mxu0 0.0
        %539 = vmatpush1.msra.mxu0 0.0
        %540 = vmatprep.subr.mxu0 0.0
        %541 = vmatpush1.msra.mxu0 0.0
        %542 = vmatprep.subr.mxu0 0.0
        %543 = vmatpush1.msra.mxu0 0.0
        %544 = vmatprep.subr.mxu0 0.0
        %545 = vmatpush1.msra.mxu0 0.0
        %546 = vmatprep.subr.mxu0 0.0
        %547 = vmatpush1.msra.mxu0 0.0
        %548 = vmatprep.subr.mxu0 0.0
        %549 = vmatpush1.msra.mxu0 0.0
        %550 = vmatprep.subr.mxu0 0.0
        %551 = vmatpush1.msra.mxu0 0.0
        %552 = vmatprep.subr.mxu0 0.0
        %553 = vmatpush1.msra.mxu0 0.0
        %554 = vmatprep.subr.mxu0 0.0
        %555 = vmatpush1.msra.mxu0 0.0
        %556 = vmatprep.subr.mxu0 0.0
        %557 = vmatpush1.msra.mxu0 0.0
        %558 = vmatprep.subr.mxu0 0.0
        %559 = vmatpush1.msra.mxu0 0.0
        %560 = vmatprep.subr.mxu0 0.0
        %561 = vmatpush1.msra.mxu0 0.0
        %562 = vmatprep.subr.mxu0 0.0
        %563 = vmatpush1.msra.mxu0 0.0
        %564 = vmatprep.subr.mxu0 0.0
        %565 = vmatpush1.msra.mxu0 0.0
        %566 = vmatprep.subr.mxu0 0.0
        %567 = vmatpush1.msra.mxu0 0.0
        %568 = vmatprep.subr.mxu0 0.0
        %569 = vmatpush1.msra.mxu0 0.0
        %570 = vmatprep.subr.mxu0 0.0
        %571 = vmatpush1.msra.mxu0 0.0
        %572 = vmatprep.subr.mxu0 0.0
        %573 = vmatpush1.msra.mxu0 0.0
        %574 = vmatprep.subr.mxu0 0.0
        %575 = vmatpush1.msra.mxu0 0.0
        %576 = vmatprep.subr.mxu0 0.0
        %577 = vmatpush1.msra.mxu0 0.0
        %578 = vmatprep.subr.mxu0 0.0
        %579 = vmatpush1.msra.mxu0 0.0
        %580 = vmatprep.subr.mxu0 0.0
        %581 = vmatpush1.msra.mxu0 0.0
        %582 = vmatprep.subr.mxu0 0.0
        %583 = vmatpush1.msra.mxu0 0.0
        %584 = vmatprep.subr.mxu0 0.0
        %585 = vmatpush1.msra.mxu0 0.0
        %586 = vmatprep.subr.mxu0 0.0
        %587 = vmatpush1.msra.mxu0 0.0
        %588 = vmatprep.mubr.f32.mxu0 0.0
        %589 = vmatmul.mubr.f32.gmra.mrb[0].mxu0 %v513
        %v590 = vpop.f32.mrb[0].mxu0
        %v591 = vadd.f32 %v494, %v590
        %v592 = vpop.f32.mrb[0].mxu0
        %v593 = vadd.f32 %v494, %v592
        %594 = vmatprep.mubr.f32.mxu0 0.0
        %595 = vmatmul.mubr.f32.gmra.mrb[0].mxu0 %v516
        %v596 = vpop.f32.mrb[0].mxu0
        %v597 = vadd.f32 %v499, %v596
        %v598 = vpop.f32.mrb[0].mxu0
        %v599 = vadd.f32 %v499, %v598
        %600 = vmatprep.mubr.f32.mxu0 0.0
        %601 = vmatmul.mubr.f32.gmra.mrb[0].mxu0 %v519
        %v602 = vpop.f32.mrb[0].mxu0
        %v603 = vadd.f32 %v504, %v602
        %v604 = vpop.f32.mrb[0].mxu0
        %v605 = vadd.f32 %v504, %v604
        %606 = vmatprep.mubr.f32.mxu0 0.0
        %607 = vmatmul.mubr.f32.gmra.mrb[0].mxu0 %v522
        %v608 = vpop.f32.mrb[0].mxu0
        %v609 = vadd.f32 %v509, %v608
        %v610 = vpop.f32.mrb[0].mxu0
        %v611 = vadd.f32 %v509, %v610
        %612 = vdwg.mxu0
        %v613 = vtanh.pop %v591
        %v614 = vtanh.pop %v593
        %v615 = vtanh.pop %v597
        %v616 = vtanh.pop %v599
        %v617 = vtanh.pop %v603
        %v618 = vtanh.pop %v605
        %v619 = vtanh.pop %v609
        %v620 = vtanh.pop %v611
        %s621 = scalar_lea.vmem [#allocation5], 32
        %v622 = vld [vmem:[%s621] sm:$0xff]
        %v623 = vld [vmem:[%s621 + $0x8] sm:$0xff]
        %v624 = vld [vmem:[%s621 + $0x10] sm:$0xff]
        %v625 = vld [vmem:[%s621 + $0x18] sm:$0xff]
        %s626 = scalar_lea.vmem [#allocation7], 32
        %v627 = vld [vmem:[%s626] sm:$0xff]
        %v628 = vld [vmem:[%s626 + $0x8] sm:$0xff]
        %v629 = vld [vmem:[%s626 + $0x10] sm:$0xff]
        %v630 = vld [vmem:[%s626 + $0x18] sm:$0xff]
        %632 = vset.pattern.permute.xlu0 0
        %633 = vperm.xlu0 %632, %v627
        %v634 = vpop.permute.xlu0 %633
        %637 = vset.pattern.permute.xlu0 0
        %638 = vperm.xlu0 %637, %v628
        %v639 = vpop.permute.xlu0 %638
        %642 = vset.pattern.permute.xlu0 0
        %643 = vperm.xlu0 %642, %v629
        %v644 = vpop.permute.xlu0 %643
        %647 = vset.pattern.permute.xlu0 0
        %648 = vperm.xlu0 %647, %v630
        %v649 = vpop.permute.xlu0 %648
        %v652 = vsel %vm511, %v622, 0
        %v655 = vsel %vm511, %v623, 0
        %v658 = vsel %vm511, %v624, 0
        %v661 = vsel %vm511, %v625, 0
        %663 = vmatprep.subr.mxu0 %v614
        %664 = vmatpush1.msra.mxu0 %v613
        %665 = vmatprep.subr.mxu0 %v616
        %666 = vmatpush1.msra.mxu0 %v615
        %667 = vmatprep.subr.mxu0 %v618
        %668 = vmatpush1.msra.mxu0 %v617
        %669 = vmatprep.subr.mxu0 %v620
        %670 = vmatpush1.msra.mxu0 %v619
        %671 = vmatprep.subr.mxu0 0.0
        %672 = vmatpush1.msra.mxu0 0.0
        %673 = vmatprep.subr.mxu0 0.0
        %674 = vmatpush1.msra.mxu0 0.0
        %675 = vmatprep.subr.mxu0 0.0
        %676 = vmatpush1.msra.mxu0 0.0
        %677 = vmatprep.subr.mxu0 0.0
        %678 = vmatpush1.msra.mxu0 0.0
        %679 = vmatprep.subr.mxu0 0.0
        %680 = vmatpush1.msra.mxu0 0.0
        %681 = vmatprep.subr.mxu0 0.0
        %682 = vmatpush1.msra.mxu0 0.0
        %683 = vmatprep.subr.mxu0 0.0
        %684 = vmatpush1.msra.mxu0 0.0
        %685 = vmatprep.subr.mxu0 0.0
        %686 = vmatpush1.msra.mxu0 0.0
        %687 = vmatprep.subr.mxu0 0.0
        %688 = vmatpush1.msra.mxu0 0.0
        %689 = vmatprep.subr.mxu0 0.0
        %690 = vmatpush1.msra.mxu0 0.0
        %691 = vmatprep.subr.mxu0 0.0
        %692 = vmatpush1.msra.mxu0 0.0
        %693 = vmatprep.subr.mxu0 0.0
        %694 = vmatpush1.msra.mxu0 0.0
        %695 = vmatprep.subr.mxu0 0.0
        %696 = vmatpush1.msra.mxu0 0.0
        %697 = vmatprep.subr.mxu0 0.0
        %698 = vmatpush1.msra.mxu0 0.0
        %699 = vmatprep.subr.mxu0 0.0
        %700 = vmatpush1.msra.mxu0 0.0
        %701 = vmatprep.subr.mxu0 0.0
        %702 = vmatpush1.msra.mxu0 0.0
        %703 = vmatprep.subr.mxu0 0.0
        %704 = vmatpush1.msra.mxu0 0.0
        %705 = vmatprep.subr.mxu0 0.0
        %706 = vmatpush1.msra.mxu0 0.0
        %707 = vmatprep.subr.mxu0 0.0
        %708 = vmatpush1.msra.mxu0 0.0
        %709 = vmatprep.subr.mxu0 0.0
        %710 = vmatpush1.msra.mxu0 0.0
        %711 = vmatprep.subr.mxu0 0.0
        %712 = vmatpush1.msra.mxu0 0.0
        %713 = vmatprep.subr.mxu0 0.0
        %714 = vmatpush1.msra.mxu0 0.0
        %715 = vmatprep.subr.mxu0 0.0
        %716 = vmatpush1.msra.mxu0 0.0
        %717 = vmatprep.subr.mxu0 0.0
        %718 = vmatpush1.msra.mxu0 0.0
        %719 = vmatprep.subr.mxu0 0.0
        %720 = vmatpush1.msra.mxu0 0.0
        %721 = vmatprep.subr.mxu0 0.0
        %722 = vmatpush1.msra.mxu0 0.0
        %723 = vmatprep.subr.mxu0 0.0
        %724 = vmatpush1.msra.mxu0 0.0
        %725 = vmatprep.subr.mxu0 0.0
        %726 = vmatpush1.msra.mxu0 0.0
        %727 = vmatprep.mubr.f32.mxu0 0.0
        %728 = vmatmul.mubr.f32.gmra.mrb[0].mxu0 %v652
        %v729 = vpop.f32.mrb[0].mxu0
        %v730 = vadd.f32 %v634, %v729
        %v731 = vpop.f32.mrb[0].mxu0
        %v732 = vadd.f32 %v634, %v731
        %733 = vmatprep.mubr.f32.mxu0 0.0
        %734 = vmatmul.mubr.f32.gmra.mrb[0].mxu0 %v655
        %v735 = vpop.f32.mrb[0].mxu0
        %v736 = vadd.f32 %v639, %v735
        %v737 = vpop.f32.mrb[0].mxu0
        %v738 = vadd.f32 %v639, %v737
        %739 = vmatprep.mubr.f32.mxu0 0.0
        %740 = vmatmul.mubr.f32.gmra.mrb[0].mxu0 %v658
        %v741 = vpop.f32.mrb[0].mxu0
        %v742 = vadd.f32 %v644, %v741
        %v743 = vpop.f32.mrb[0].mxu0
        %v744 = vadd.f32 %v644, %v743
        %745 = vmatprep.mubr.f32.mxu0 0.0
        %746 = vmatmul.mubr.f32.gmra.mrb[0].mxu0 %v661
        %v747 = vpop.f32.mrb[0].mxu0
        %v748 = vadd.f32 %v649, %v747
        %v749 = vpop.f32.mrb[0].mxu0
        %v750 = vadd.f32 %v649, %v749
        %751 = vdwg.mxu0
        %v752 = vtanh.pop %v730
        %v753 = vtanh.pop %v732
        %v754 = vtanh.pop %v736
        %v755 = vtanh.pop %v738
        %v756 = vtanh.pop %v742
        %v757 = vtanh.pop %v744
        %v758 = vtanh.pop %v748
        %v759 = vtanh.pop %v750
        %v760 = vld [vmem:[#allocation8] sm:$0xff]
        %v761 = vld [vmem:[#allocation8 + $0x8] sm:$0xff]
        %v762 = vld [vmem:[#allocation8 + $0x10] sm:$0xff]
        %v763 = vld [vmem:[#allocation8 + $0x18] sm:$0xff]
        %765 = vset.pattern.permute.xlu0 0
        %766 = vperm.xlu0 %765, %v760
        %v767 = vpop.permute.xlu0 %766
        %770 = vset.pattern.permute.xlu0 0
        %771 = vperm.xlu0 %770, %v761
        %v772 = vpop.permute.xlu0 %771
        %775 = vset.pattern.permute.xlu0 0
        %776 = vperm.xlu0 %775, %v762
        %v777 = vpop.permute.xlu0 %776
        %780 = vset.pattern.permute.xlu0 0
        %781 = vperm.xlu0 %780, %v763
        %v782 = vpop.permute.xlu0 %781
        %v784 = vmul.f32 %v752, %v767
        %v785 = vmul.f32 %v753, %v767
        %v786 = vmul.f32 %v754, %v772
        %v787 = vmul.f32 %v755, %v772
        %v788 = vmul.f32 %v756, %v777
        %v789 = vmul.f32 %v757, %v777
        %v790 = vmul.f32 %v758, %v782
        %v791 = vmul.f32 %v759, %v782
        %v792 = vadd.f32 %v784, %v786
        %v793 = vadd.f32 %v792, %v788
        %v794 = vadd.f32 %v793, %v790
        %v795 = vrot.slane %v794, 4
        %v796 = vadd.f32 %v794, %v795
        %v797 = vrot.slane %v796, 2
        %v798 = vadd.f32 %v796, %v797
        %v799 = vrot.slane %v798, 1
        %v800 = vadd.f32 %v798, %v799
        %v801 = vadd.f32 %v785, %v787
        %v802 = vadd.f32 %v801, %v789
        %v803 = vadd.f32 %v802, %v791
        %v804 = vrot.slane %v803, 4
        %v805 = vadd.f32 %v803, %v804
        %v806 = vrot.slane %v805, 2
        %v807 = vadd.f32 %v805, %v806
        %v808 = vrot.slane %v807, 1
        %v809 = vadd.f32 %v807, %v808
        %v810 = vld [vmem:[#allocation2] sm:$0x1]
        %812 = vset.pattern.permute.xlu0 0
        %813 = vperm.xlu0 %812, %v810
        %v814 = vpop.permute.xlu0 %813
        %v816 = vlaneseq
        %v817 = vshrl.u32 %v816, 7
        %v818 = vsub.s32 0, %v817
        %v819 = vrot.slane %v814, %v818
        %v820 = vadd.f32 %v800, %v819
        %v821 = vadd.f32 %v809, %v819
        %v822 = vxor.u32 %v820, 2147483648
        %v823 = vxor.u32 %v821, 2147483648
        %v824 = vmul.f32 %v822, 1.442695
        %v825 = vpow.pop %v824
        %v826 = vmul.f32 %v823, 1.442695
        %v827 = vpow.pop %v826
        %v828 = vadd.f32 %v825, 1.0
        %v829 = vadd.f32 %v827, 1.0
        %v830 = vrcp.pop %v828
        %v831 = vmul.f32 1.0, %v830
        %v832 = vrcp.pop %v829
        %v833 = vmul.f32 1.0, %v832
        %v834 = vmul.f32 %v831, 1.5
        %v835 = vmul.f32 %v833, 1.5
        %v838 = vcombine.low %v834, %v835
        %v840 = vunpack.c.l.s4 1966171168
        %v841 = vunpack.c.0.s8 %v840
        %v842 = vlaneseq
        %v843 = vshrl.u32 %v842, 7
        %v844 = vsub.s32 %v841, %v843
        %v845 = vrot.slane %v838, %v844
        %v847 = vunpack.c.l.s4 1966171168
        %v848 = vunpack.c.0.s8 %v847
        %v849 = vlaneseq
        %v850 = vshrl.u32 %v849, 7
        %v851 = vsub.s32 %v848, %v850
        %v852 = vrot.slane %v845, %v851
        %v854 = vlaneseq
        %vm855 = vcmp.ge.s32.totalorder %v854, 0
        %vm856 = vcmp.lt.s32.totalorder %v854, 256
        %vm857 = vmand %vm855, %vm856
        %858 = vst.msk [vmem:[%s339] sm:$0x3] %vm857, %v852
        %s859 = smul.u32 2, %s23
        %p860 = scmp.lt.s32.totalorder %s859, 3
        %s861 = scalar_select %p860, %s859, 3
        %s862 = scalar_lea.vmem %s7, %s861
        // Predicated region
        $region65: #{_lambda_.1} parent=47 // pred_check
          %p863 = pneg %p193
        $region66: #{_lambda_.1} parent=47 // pred_check_branch
          %865 = sbr.rel (%p863) target = $region68
        $region67: #{_lambda_.1} parent=47 // pred_region
          %s866 = smul.u32 2, %s23
        $region68: #{_lambda_.1} parent=47 // pred_fallthru
          _
      $region48: #{_lambda_.1} parent=5 // pred_fallthru
        _
      %p867 = scmp.le.s32.totalorder 2, %s18
      // Predicated region
      $region69: #{_lambda_.1} parent=5 // pred_check
        %p868 = pneg %p867
      $region70: #{_lambda_.1} parent=5 // pred_check_branch
        %870 = sbr.rel (%p868) target = $region72
      $region71: #{_lambda_.1} parent=5 // pred_region
        %s871 = ssub.s32 %s18, 2
        // Predicated region
        $region73: #{_lambda_.1} parent=71 // pred_check
          %p872 = pneg %p199
        $region74: #{_lambda_.1} parent=71 // pred_check_branch
          %874 = sbr.rel (%p872) target = $region76
        $region75: #{_lambda_.1} parent=71 // pred_region
          %s875 = smul.u32 2, %s24
          %p876 = scmp.lt.s32.totalorder %s875, 3
          %s877 = scalar_select %p876, %s875, 3
          %s878 = scalar_lea.vmem %s7, %s877
        $region76: #{_lambda_.1} parent=71 // pred_fallthru
          _
      $region72: #{_lambda_.1} parent=5 // pred_fallthru
        _
    $region6: #{_lambda_.1} parent=1 // loop_footer
      %s22 = sadd.s32 1, %s18
    $region7: #{_lambda_.1} parent=1 // loop_footer_branch
      %17 = sbr.rel target = $region3
    $region8: #{_lambda_.1} parent=1 // loop_exit
      _
    %879 = vsyncpa [#allocation4], 1
    %s880 = scalar_lea.sflag [#allocation4], 1
    %881 = vsyncpa %s880, 1
    %882 = vsyncpa [#allocation6], 1
    %883 = vsyncpa [#allocation9], 1

</llo_original>
